<compile_context>
chip_gen: v7x
topology: tpu7x:2x2x1
jax: 0.10.0
libtpu: 0.0.40
codegen_flags: <defaults>
</compile_context>

<pallas_src>
import functools

import jax
import jax.numpy as jnp
from jax.experimental import pallas as pl
from jax.experimental.pallas import tpu as pltpu

EPS = 1e-5


# ------------------------------- fused kernel --------------------------------
def _deep_net_kernel(*refs, num_layers):
    """refs = (xT_ref, w_0, b_0, w_1, b_1, ..., w_{L-1}, b_{L-1}, outT_ref).

    Transposed layout: activations are [features, batch_tile] so the batch tile
    (a multiple of 128, or the full batch) sits on the lane axis.  Layer i:
        h <- w_i @ h + b_i     (w_i: bf16 [C_out, C_in], b_i: f32 [C_out, 1])
    ReLU on all but the last layer.  The dot accumulates in f32 on the MXU;
    activations are cast back to bf16 only as the next layer's MXU input.
    (Eval-mode BN is folded into (w_i, b_i) offline; Dropout1d is identity.)
    """
    x_ref, out_ref = refs[0], refs[-1]
    wb = refs[1:-1]
    h = x_ref[...]                                              # bf16 [C_in, tb]
    for i in range(num_layers):
        w = wb[2 * i][...]                                      # bf16 [C_out, C_in]
        b = wb[2 * i + 1][...]                                  # f32  [C_out, 1]
        acc = jnp.dot(w, h, preferred_element_type=jnp.float32) + b   # f32 [C_out, tb]
        if i < num_layers - 1:
            h = jnp.maximum(acc, 0.0).astype(jnp.bfloat16)      # elementwise in f32, cast for MXU
        else:
            h = acc
    out_ref[...] = h.astype(out_ref.dtype)


# -------------------- one-time parameter preprocessing ------------------------
def fold_bn_into_linear(bn, w_pt, weights_dtype=jnp.bfloat16):
    """Fold eval-mode BatchNorm1d into the following bias-free Linear (transposed layout).

    bn: dict of gamma/beta/mean/var, each [C_in].
    w_pt: PyTorch-layout Linear weight [C_out, C_in].
    Returns (w' [C_out, C_in] for left-multiplication of h^T, b' [C_out, 1]).
    """
    s = bn["gamma"] * jax.lax.rsqrt(bn["var"] + EPS)            # [C_in]
    shift = bn["beta"] - bn["mean"] * s                         # [C_in]
    w = (w_pt * s[None, :]).astype(weights_dtype)               # [C_out, C_in]
    b = (w_pt @ shift)[:, None].astype(jnp.float32)             # [C_out, 1]
    return w, b


def prepare_params(raw, weights_dtype=jnp.bfloat16):
    """Hoisted out of the hot path: BN folding + dtype cast, done once."""
    flat = []
    for bn, w in zip(raw["bns"], raw["ws"]):
        flat.extend(fold_bn_into_linear(bn, w, weights_dtype))
    return tuple(flat)


# --------------------------------- wrapper ------------------------------------
def _pick_batch_tile(B):
    """One grid step on single-TC chips (v5e/v6e); >=2 'parallel' steps on v7x (2 TCs)."""
    try:
        kind = jax.devices()[0].device_kind.lower()
    except Exception:
        kind = ""
    two_tc = ("v7" in kind) or ("7x" in kind)
    if two_tc and B > 128:
        # Split the batch across both TensorCores; lane-axis tiles must be multiples of 128.
        return min(B, max(128, pl.cdiv(pl.cdiv(B, 2), 128) * 128))
    return B


def deep_network_forward(folded, x, *, num_layers, batch_tile=None):
    B, D = x.shape
    tb = batch_tile if batch_tile is not None else _pick_batch_tile(B)
    tb = min(tb, B)
    grid = (pl.cdiv(B, tb),)

    # Present the kernel a lane-dense [features, batch] slab (bf16); undone on the way out.
    xT = jnp.transpose(x).astype(jnp.bfloat16)                  # [D, B]

    in_specs = [pl.BlockSpec((D, tb), lambda i: (0, i))]
    flops = 0
    weight_bytes = 0
    for w, b in zip(folded[0::2], folded[1::2]):
        # Constant index_maps -> weights/biases stay VMEM-resident across batch tiles.
        in_specs.append(pl.BlockSpec(w.shape, lambda i: (0, 0)))
        in_specs.append(pl.BlockSpec(b.shape, lambda i: (0, 0)))
        flops += 2 * B * w.shape[0] * w.shape[1]
        weight_bytes += w.size * w.dtype.itemsize + b.size * b.dtype.itemsize

    cost = pl.CostEstimate(
        flops=flops,
        transcendentals=0,
        bytes_accessed=xT.size * xT.dtype.itemsize + B * D * 4 + weight_bytes,
    )

    kern = functools.partial(_deep_net_kernel, num_layers=num_layers)
    outT = pl.pallas_call(
        kern,
        out_shape=jax.ShapeDtypeStruct((D, B), jnp.float32),
        grid=grid,
        in_specs=in_specs,
        out_specs=pl.BlockSpec((D, tb), lambda i: (0, i)),
        compiler_params=pltpu.CompilerParams(
            dimension_semantics=("parallel",),
            # Explicit VMEM budget; leaves headroom on v7x's 64 MiB physical VMEM.
            vmem_limit_bytes=32 * 1024 * 1024,
        ),
        cost_estimate=cost,
    )(xT, *folded)
    return jnp.transpose(outT)                                  # back to [B, D]


# --------------------------- reference (plain JAX) -----------------------------
def deep_network_reference(raw, x):
    """Eval-mode forward exactly as the PyTorch module: BN -> (Dropout=id) -> Linear [-> ReLU]."""
    h = x
    n = len(raw["ws"])
    for i, (bn, w) in enumerate(zip(raw["bns"], raw["ws"])):
        s = bn["gamma"] * jax.lax.rsqrt(bn["var"] + EPS)
        h = (h - bn["mean"]) * s + bn["beta"]
        h = h @ w.T                       # Linear, bias=False
        if i < n - 1:
            h = jnp.maximum(h, 0.0)
    return h


def init_params(key, num_layers, in_features):
    D = in_features
    dims = [D] + [2 * D] * (num_layers - 1) + [D]
    bns, ws = [], []
    keys = jax.random.split(key, num_layers)
    for i in range(num_layers):
        c_in, c_out = dims[i], dims[i + 1]
        k1, k2, k3, k4, k5 = jax.random.split(keys[i], 5)
        bns.append({
            "gamma": jax.random.uniform(k1, (c_in,), jnp.float32, 0.5, 1.5),
            "beta": 0.1 * jax.random.normal(k2, (c_in,), jnp.float32),
            "mean": 0.1 * jax.random.normal(k3, (c_in,), jnp.float32),
            "var": jax.random.uniform(k4, (c_in,), jnp.float32, 0.5, 1.5),
        })
        ws.append(jax.random.normal(k5, (c_out, c_in), jnp.float32)
                  / jnp.sqrt(jnp.float32(c_in)))
    return {"bns": bns, "ws": ws}


if __name__ == "__main__":
    key = jax.random.PRNGKey(0)
    num_layers, in_features = 3, 32          # layers: 32->64, 64->64, 64->32
    B = 256                                  # 1 grid step on v5e/v6e, 2 parallel steps on v7x

    kx, kp = jax.random.split(key)
    x = jax.random.normal(kx, (B, in_features), jnp.float32)
    raw = init_params(kp, num_layers, in_features)
    folded = prepare_params(raw)             # one-time: BN fold + bf16 cast

    fwd = jax.jit(functools.partial(deep_network_forward, num_layers=num_layers))
    out = jax.block_until_ready(fwd(folded, x))

    assert out.shape == (B, in_features), out.shape
    assert out.dtype == jnp.float32
    assert bool(jnp.all(jnp.isfinite(out)))

    ref = deep_network_reference(raw, x)
    max_err = float(jnp.max(jnp.abs(out - ref)))
    # bf16 weights/activations (f32 accumulation) vs the fully-f32 reference.
    assert bool(jnp.allclose(out, ref, rtol=5e-2, atol=1e-1)), max_err

    print("KERNEL_OK")
</pallas_src>

<mosaic_0001>
module attributes {stable_mosaic.version = 11 : i64} {
  func.func @_deep_net_kernel(%arg0: i32, %arg1: memref<32x256xbf16, #tpu.memory_space<vmem>>, %arg2: memref<64x32xbf16, #tpu.memory_space<vmem>>, %arg3: memref<64x1xf32, #tpu.memory_space<vmem>>, %arg4: memref<64x64xbf16, #tpu.memory_space<vmem>>, %arg5: memref<64x1xf32, #tpu.memory_space<vmem>>, %arg6: memref<32x64xbf16, #tpu.memory_space<vmem>>, %arg7: memref<32x1xf32, #tpu.memory_space<vmem>>, %arg8: memref<32x256xf32, #tpu.memory_space<vmem>>) attributes {dimension_semantics = [#tpu.dimension_semantics<parallel>], iteration_bounds = array<i64: 1>, scalar_prefetch = 0 : i64, scratch_operands = 0 : i64, tpu.core_type = #tpu.core_type<tc>, window_params = [{transform_indices = @transform_0, window_bounds = array<i64: 32, 256>}, {pipeline_mode = #tpu.pipeline_mode<synchronous>, transform_indices = @transform_1, window_bounds = array<i64: 64, 32>}, {pipeline_mode = #tpu.pipeline_mode<synchronous>, transform_indices = @transform_2, window_bounds = array<i64: 64, 1>}, {pipeline_mode = #tpu.pipeline_mode<synchronous>, transform_indices = @transform_3, window_bounds = array<i64: 64, 64>}, {pipeline_mode = #tpu.pipeline_mode<synchronous>, transform_indices = @transform_4, window_bounds = array<i64: 64, 1>}, {pipeline_mode = #tpu.pipeline_mode<synchronous>, transform_indices = @transform_5, window_bounds = array<i64: 32, 64>}, {pipeline_mode = #tpu.pipeline_mode<synchronous>, transform_indices = @transform_6, window_bounds = array<i64: 32, 1>}, {transform_indices = @transform_7, window_bounds = array<i64: 32, 256>}]} {
    %c0 = arith.constant 0 : index
    %c0_0 = arith.constant 0 : index
    %0 = vector.load %arg1[%c0, %c0_0] : memref<32x256xbf16, #tpu.memory_space<vmem>>, vector<32x256xbf16>
    %c0_1 = arith.constant 0 : index
    %c0_2 = arith.constant 0 : index
    %1 = vector.load %arg2[%c0_1, %c0_2] : memref<64x32xbf16, #tpu.memory_space<vmem>>, vector<64x32xbf16>
    %c0_3 = arith.constant 0 : index
    %c0_4 = arith.constant 0 : index
    %2 = vector.load %arg3[%c0_3, %c0_4] : memref<64x1xf32, #tpu.memory_space<vmem>>, vector<64x1xf32>
    %cst = arith.constant dense<0.000000e+00> : vector<64x256xf32>
    %3 = tpu.matmul %1, %0, %cst {dimension_numbers = #tpu.dot_dimension_numbers<[1], [0], [0], [1], [0, 0, 1, 1], [], []>} : vector<64x32xbf16>, vector<32x256xbf16>, vector<64x256xf32> -> vector<64x256xf32>
    %4 = vector.broadcast %2 : vector<64x1xf32> to vector<64x256xf32>
    %5 = arith.addf %3, %4 : vector<64x256xf32>
    %cst_5 = arith.constant 0.000000e+00 : f32
    %6 = vector.broadcast %cst_5 : f32 to vector<64x256xf32>
    %7 = arith.maximumf %5, %6 : vector<64x256xf32>
    %8 = arith.truncf %7 : vector<64x256xf32> to vector<64x256xbf16>
    %c0_6 = arith.constant 0 : index
    %c0_7 = arith.constant 0 : index
    %9 = vector.load %arg4[%c0_6, %c0_7] : memref<64x64xbf16, #tpu.memory_space<vmem>>, vector<64x64xbf16>
    %c0_8 = arith.constant 0 : index
    %c0_9 = arith.constant 0 : index
    %10 = vector.load %arg5[%c0_8, %c0_9] : memref<64x1xf32, #tpu.memory_space<vmem>>, vector<64x1xf32>
    %cst_10 = arith.constant dense<0.000000e+00> : vector<64x256xf32>
    %11 = tpu.matmul %9, %8, %cst_10 {dimension_numbers = #tpu.dot_dimension_numbers<[1], [0], [0], [1], [0, 0, 1, 1], [], []>} : vector<64x64xbf16>, vector<64x256xbf16>, vector<64x256xf32> -> vector<64x256xf32>
    %12 = vector.broadcast %10 : vector<64x1xf32> to vector<64x256xf32>
    %13 = arith.addf %11, %12 : vector<64x256xf32>
    %cst_11 = arith.constant 0.000000e+00 : f32
    %14 = vector.broadcast %cst_11 : f32 to vector<64x256xf32>
    %15 = arith.maximumf %13, %14 : vector<64x256xf32>
    %16 = arith.truncf %15 : vector<64x256xf32> to vector<64x256xbf16>
    %c0_12 = arith.constant 0 : index
    %c0_13 = arith.constant 0 : index
    %17 = vector.load %arg6[%c0_12, %c0_13] : memref<32x64xbf16, #tpu.memory_space<vmem>>, vector<32x64xbf16>
    %c0_14 = arith.constant 0 : index
    %c0_15 = arith.constant 0 : index
    %18 = vector.load %arg7[%c0_14, %c0_15] : memref<32x1xf32, #tpu.memory_space<vmem>>, vector<32x1xf32>
    %cst_16 = arith.constant dense<0.000000e+00> : vector<32x256xf32>
    %19 = tpu.matmul %17, %16, %cst_16 {dimension_numbers = #tpu.dot_dimension_numbers<[1], [0], [0], [1], [0, 0, 1, 1], [], []>} : vector<32x64xbf16>, vector<64x256xbf16>, vector<32x256xf32> -> vector<32x256xf32>
    %20 = vector.broadcast %18 : vector<32x1xf32> to vector<32x256xf32>
    %21 = arith.addf %19, %20 : vector<32x256xf32>
    %c0_17 = arith.constant 0 : index
    %c0_18 = arith.constant 0 : index
    %22 = vector.load %arg8[%c0_17, %c0_18] : memref<32x256xf32, #tpu.memory_space<vmem>>, vector<32x256xf32>
    tpu.vector_store %arg8[%c0_17, %c0_18], %21 {strides = array<i32>} : memref<32x256xf32, #tpu.memory_space<vmem>>, vector<32x256xf32>,
    return
  }
  func.func @transform_0(%arg0: i32) -> (i32, i32) {
    %c0_i32 = arith.constant 0 : i32
    %c0_i32_0 = arith.constant 0 : i32
    return %c0_i32, %arg0 : i32, i32
  }
  func.func @transform_1(%arg0: i32) -> (i32, i32) {
    %c0_i32 = arith.constant 0 : i32
    %c0_i32_0 = arith.constant 0 : i32
    %c0_i32_1 = arith.constant 0 : i32
    return %c0_i32, %c0_i32_0 : i32, i32
  }
  func.func @transform_2(%arg0: i32) -> (i32, i32) {
    %c0_i32 = arith.constant 0 : i32
    %c0_i32_0 = arith.constant 0 : i32
    %c0_i32_1 = arith.constant 0 : i32
    return %c0_i32, %c0_i32_0 : i32, i32
  }
  func.func @transform_3(%arg0: i32) -> (i32, i32) {
    %c0_i32 = arith.constant 0 : i32
    %c0_i32_0 = arith.constant 0 : i32
    %c0_i32_1 = arith.constant 0 : i32
    return %c0_i32, %c0_i32_0 : i32, i32
  }
  func.func @transform_4(%arg0: i32) -> (i32, i32) {
    %c0_i32 = arith.constant 0 : i32
    %c0_i32_0 = arith.constant 0 : i32
    %c0_i32_1 = arith.constant 0 : i32
    return %c0_i32, %c0_i32_0 : i32, i32
  }
  func.func @transform_5(%arg0: i32) -> (i32, i32) {
    %c0_i32 = arith.constant 0 : i32
    %c0_i32_0 = arith.constant 0 : i32
    %c0_i32_1 = arith.constant 0 : i32
    return %c0_i32, %c0_i32_0 : i32, i32
  }
  func.func @transform_6(%arg0: i32) -> (i32, i32) {
    %c0_i32 = arith.constant 0 : i32
    %c0_i32_0 = arith.constant 0 : i32
    %c0_i32_1 = arith.constant 0 : i32
    return %c0_i32, %c0_i32_0 : i32, i32
  }
  func.func @transform_7(%arg0: i32) -> (i32, i32) {
    %c0_i32 = arith.constant 0 : i32
    %c0_i32_0 = arith.constant 0 : i32
    return %c0_i32, %arg0 : i32, i32
  }
}

</mosaic_0001>

<llo_original>
// kernel: deep_network_forward.1
$region0: #{deep_network_forward.1}
  #allocation0 [shape = 'u32[]', space=smem, size = 0x4, offset = 0x4, fixed_abs, tag = 'smem constant byte address 0x4 - core index']
  #allocation1 [shape = 'u32[144,128]{1,0:T(1,128)}', space=vmem, size = 0x12000, scoped, tag = 'internal scratch']
  %s0 = inlined_call_operand.vmem [shape: bf16[32,256], index: 0, kind: input, shape index: {}]
  %s1 = inlined_call_operand.vmem [shape: bf16[64,32], index: 1, kind: input, shape index: {}]
  %s2 = inlined_call_operand.vmem [shape: f32[64,1], index: 2, kind: input, shape index: {}]
  %s3 = inlined_call_operand.vmem [shape: bf16[64,64], index: 3, kind: input, shape index: {}]
  %s4 = inlined_call_operand.vmem [shape: f32[64,1], index: 4, kind: input, shape index: {}]
  %s5 = inlined_call_operand.vmem [shape: bf16[32,64], index: 5, kind: input, shape index: {}]
  %s6 = inlined_call_operand.vmem [shape: f32[32,1], index: 6, kind: input, shape index: {}]
  %s7 = inlined_call_operand.hbm [shape: f32[32,256], index: 7, kind: output, shape index: {}]
  %s8 = sld [smem:[#allocation0]]
  $region38: #{deep_network_forward.1} parent=0
    _
  %s10 = ssub.s32 1, %s8
  %s11 = scalar_select 0, %s10, %s8
  $region1: #{deep_network_forward.1} parent=0
    #allocation2 [shape = 'u8[32768]{0}', space=vmem, size = 0x8000, scoped, tag = 'output window, operand 0, single buffered']
    #allocation3 [shape = 's32[1]{0}', space=sflag, size = 0x4, scoped, tag = 'scoped memory for deep_network_forward.1']
    %12 = vsyncpa [#allocation3], 0
    // Predicated region
    $region2: #{deep_network_forward.1} parent=1 // pred_check
      _
    $region3: #{deep_network_forward.1} parent=1 // pred_check_branch
      %14 = sbr.rel (0) target = $region5
    $region4: #{deep_network_forward.1} parent=1 // pred_region
      _
    $region5: #{deep_network_forward.1} parent=1 // pred_fallthru
      _
    // Predicated region
    $region6: #{deep_network_forward.1} parent=1 // pred_check
      _
    $region7: #{deep_network_forward.1} parent=1 // pred_check_branch
      %16 = sbr.rel (0) target = $region9
    $region8: #{deep_network_forward.1} parent=1 // pred_region
      _
    $region9: #{deep_network_forward.1} parent=1 // pred_fallthru
      _
    // Predicated region
    $region10: #{deep_network_forward.1} parent=1 // pred_check
      _
    $region11: #{deep_network_forward.1} parent=1 // pred_check_branch
      %18 = sbr.rel (0) target = $region13
    $region12: #{deep_network_forward.1} parent=1 // pred_region
      _
    $region13: #{deep_network_forward.1} parent=1 // pred_fallthru
      _
    // Predicated region
    $region14: #{deep_network_forward.1} parent=1 // pred_check
      _
    $region15: #{deep_network_forward.1} parent=1 // pred_check_branch
      %20 = sbr.rel (0) target = $region17
    $region16: #{deep_network_forward.1} parent=1 // pred_region
      _
    $region17: #{deep_network_forward.1} parent=1 // pred_fallthru
      _
    // Predicated region
    $region18: #{deep_network_forward.1} parent=1 // pred_check
      _
    $region19: #{deep_network_forward.1} parent=1 // pred_check_branch
      %22 = sbr.rel (0) target = $region21
    $region20: #{deep_network_forward.1} parent=1 // pred_region
      _
    $region21: #{deep_network_forward.1} parent=1 // pred_fallthru
      _
    // Predicated region
    $region22: #{deep_network_forward.1} parent=1 // pred_check
      _
    $region23: #{deep_network_forward.1} parent=1 // pred_check_branch
      %24 = sbr.rel (0) target = $region25
    $region24: #{deep_network_forward.1} parent=1 // pred_region
      _
    $region25: #{deep_network_forward.1} parent=1 // pred_fallthru
      _
    // Predicated region
    $region26: #{deep_network_forward.1} parent=1 // pred_check
      _
    $region27: #{deep_network_forward.1} parent=1 // pred_check_branch
      %26 = sbr.rel (0) target = $region29
    $region28: #{deep_network_forward.1} parent=1 // pred_region
      _
    $region29: #{deep_network_forward.1} parent=1 // pred_fallthru
      _
    %v28 = vld [vmem:[%s0] sm:$0xff]
    %v29 = vld [vmem:[%s0 + $0x8] sm:$0xff]
    %v30 = vld [vmem:[%s0 + $0x10] sm:$0xff]
    %v31 = vld [vmem:[%s0 + $0x18] sm:$0xff]
    %v32 = vld [vmem:[%s1] sm:$0xf]
    %v33 = vld [vmem:[%s1 + $0x4] sm:$0xf]
    %v34 = vld [vmem:[%s1 + $0x8] sm:$0xf]
    %v35 = vld [vmem:[%s1 + $0xc] sm:$0xf]
    %v36 = vld [vmem:[%s1 + $0x10] sm:$0xf]
    %v37 = vld [vmem:[%s1 + $0x14] sm:$0xf]
    %v38 = vld [vmem:[%s1 + $0x18] sm:$0xf]
    %v39 = vld [vmem:[%s1 + $0x1c] sm:$0xf]
    %v40 = vld [vmem:[%s2] sm:$0xff]
    %v41 = vld [vmem:[%s2 + $0x8] sm:$0xff]
    %v42 = vld [vmem:[%s2 + $0x10] sm:$0xff]
    %v43 = vld [vmem:[%s2 + $0x18] sm:$0xff]
    %v44 = vld [vmem:[%s2 + $0x20] sm:$0xff]
    %v45 = vld [vmem:[%s2 + $0x28] sm:$0xff]
    %v46 = vld [vmem:[%s2 + $0x30] sm:$0xff]
    %v47 = vld [vmem:[%s2 + $0x38] sm:$0xff]
    %49 = vset.pattern.permute.xlu0 0
    %50 = vperm.xlu0 %49, %v40
    %v51 = vpop.permute.xlu0 %50
    %54 = vset.pattern.permute.xlu0 0
    %55 = vperm.xlu0 %54, %v41
    %v56 = vpop.permute.xlu0 %55
    %59 = vset.pattern.permute.xlu0 0
    %60 = vperm.xlu0 %59, %v42
    %v61 = vpop.permute.xlu0 %60
    %64 = vset.pattern.permute.xlu0 0
    %65 = vperm.xlu0 %64, %v43
    %v66 = vpop.permute.xlu0 %65
    %69 = vset.pattern.permute.xlu0 0
    %70 = vperm.xlu0 %69, %v44
    %v71 = vpop.permute.xlu0 %70
    %74 = vset.pattern.permute.xlu0 0
    %75 = vperm.xlu0 %74, %v45
    %v76 = vpop.permute.xlu0 %75
    %79 = vset.pattern.permute.xlu0 0
    %80 = vperm.xlu0 %79, %v46
    %v81 = vpop.permute.xlu0 %80
    %84 = vset.pattern.permute.xlu0 0
    %85 = vperm.xlu0 %84, %v47
    %v86 = vpop.permute.xlu0 %85
    %v96 = vunpack.c.l.b16 %v32
    %v97 = vunpack.c.l.b16 %v33
    %v98 = vunpack.c.l.b16 %v34
    %v99 = vunpack.c.l.b16 %v35
    %v100 = vunpack.c.l.b16 %v36
    %v101 = vunpack.c.l.b16 %v37
    %v102 = vunpack.c.l.b16 %v38
    %v103 = vunpack.c.l.b16 %v39
    %v104 = vpack.c.b16 %v97, %v96
    %v105 = vpack.c.b16 %v99, %v98
    %v106 = vpack.c.b16 %v101, %v100
    %v107 = vpack.c.b16 %v103, %v102
    %v112 = vunpack.c.l.b16 %v28
    %v113 = vunpack.c.h.b16 %v28
    %v114 = vunpack.c.l.b16 %v29
    %v115 = vunpack.c.h.b16 %v29
    %v116 = vunpack.c.l.b16 %v30
    %v117 = vunpack.c.h.b16 %v30
    %v118 = vunpack.c.l.b16 %v31
    %v119 = vunpack.c.h.b16 %v31
    %v120 = vpack.c.b16 %v114, %v112
    %v121 = vpack.c.b16 %v115, %v113
    %v122 = vpack.c.b16 %v118, %v116
    %v123 = vpack.c.b16 %v119, %v117
    %vm128 = vcmask 261120
    %v130 = vsel %vm128, %v104, 0
    %v133 = vsel %vm128, %v105, 0
    %v136 = vsel %vm128, %v106, 0
    %v139 = vsel %vm128, %v107, 0
    %141 = vmatprep.subr.bf16.mxu0 %v121
    %142 = vmatpush1.bf16.msra.mxu0 %v120
    %143 = vmatprep.subr.bf16.mxu0 %v123
    %144 = vmatpush1.bf16.msra.mxu0 %v122
    %145 = vmatprep.subr.bf16.mxu0 0
    %146 = vmatpush1.bf16.msra.mxu0 0
    %147 = vmatprep.subr.bf16.mxu0 0
    %148 = vmatpush1.bf16.msra.mxu0 0
    %149 = vmatprep.subr.bf16.mxu0 0
    %150 = vmatpush1.bf16.msra.mxu0 0
    %151 = vmatprep.subr.bf16.mxu0 0
    %152 = vmatpush1.bf16.msra.mxu0 0
    %153 = vmatprep.subr.bf16.mxu0 0
    %154 = vmatpush1.bf16.msra.mxu0 0
    %155 = vmatprep.subr.bf16.mxu0 0
    %156 = vmatpush1.bf16.msra.mxu0 0
    %157 = vmatprep.subr.bf16.mxu0 0
    %158 = vmatpush1.bf16.msra.mxu0 0
    %159 = vmatprep.subr.bf16.mxu0 0
    %160 = vmatpush1.bf16.msra.mxu0 0
    %161 = vmatprep.subr.bf16.mxu0 0
    %162 = vmatpush1.bf16.msra.mxu0 0
    %163 = vmatprep.subr.bf16.mxu0 0
    %164 = vmatpush1.bf16.msra.mxu0 0
    %165 = vmatprep.subr.bf16.mxu0 0
    %166 = vmatpush1.bf16.msra.mxu0 0
    %167 = vmatprep.subr.bf16.mxu0 0
    %168 = vmatpush1.bf16.msra.mxu0 0
    %169 = vmatprep.subr.bf16.mxu0 0
    %170 = vmatpush1.bf16.msra.mxu0 0
    %171 = vmatprep.subr.bf16.mxu0 0
    %172 = vmatpush1.bf16.msra.mxu0 0
    %173 = vmatprep.mubr.bf16.mxu0 0
    %174 = vmatmul.mubr.bf16.gmra.mrb[0].mxu0 %v130
    %v175 = vpop.f32.mrb[0].mxu0
    %v176 = vadd.f32 %v51, %v175
    %v177 = vpop.f32.mrb[0].mxu0
    %v178 = vadd.f32 %v51, %v177
    %v179 = vpop.f32.mrb[0].mxu0
    %v180 = vadd.f32 %v56, %v179
    %v181 = vpop.f32.mrb[0].mxu0
    %v182 = vadd.f32 %v56, %v181
    %183 = vmatprep.mubr.bf16.mxu0 0
    %184 = vmatmul.mubr.bf16.gmra.mrb[0].mxu0 %v133
    %v185 = vpop.f32.mrb[0].mxu0
    %v186 = vadd.f32 %v61, %v185
    %v187 = vpop.f32.mrb[0].mxu0
    %v188 = vadd.f32 %v61, %v187
    %v189 = vpop.f32.mrb[0].mxu0
    %v190 = vadd.f32 %v66, %v189
    %v191 = vpop.f32.mrb[0].mxu0
    %v192 = vadd.f32 %v66, %v191
    %193 = vmatprep.mubr.bf16.mxu0 0
    %194 = vmatmul.mubr.bf16.gmra.mrb[0].mxu0 %v136
    %v195 = vpop.f32.mrb[0].mxu0
    %v196 = vadd.f32 %v71, %v195
    %v197 = vpop.f32.mrb[0].mxu0
    %v198 = vadd.f32 %v71, %v197
    %v199 = vpop.f32.mrb[0].mxu0
    %v200 = vadd.f32 %v76, %v199
    %v201 = vpop.f32.mrb[0].mxu0
    %v202 = vadd.f32 %v76, %v201
    %203 = vmatprep.mubr.bf16.mxu0 0
    %204 = vmatmul.mubr.bf16.gmra.mrb[0].mxu0 %v139
    %v205 = vpop.f32.mrb[0].mxu0
    %v206 = vadd.f32 %v81, %v205
    %v207 = vpop.f32.mrb[0].mxu0
    %v208 = vadd.f32 %v81, %v207
    %v209 = vpop.f32.mrb[0].mxu0
    %v210 = vadd.f32 %v86, %v209
    %v211 = vpop.f32.mrb[0].mxu0
    %v212 = vadd.f32 %v86, %v211
    %213 = vdwg.mxu0
    %v214 = vmax.f32 %v176, 0.0
    %v215 = vmax.f32 %v178, 0.0
    %v216 = vmax.f32 %v180, 0.0
    %v217 = vmax.f32 %v182, 0.0
    %v218 = vmax.f32 %v186, 0.0
    %v219 = vmax.f32 %v188, 0.0
    %v220 = vmax.f32 %v190, 0.0
    %v221 = vmax.f32 %v192, 0.0
    %v222 = vmax.f32 %v196, 0.0
    %v223 = vmax.f32 %v198, 0.0
    %v224 = vmax.f32 %v200, 0.0
    %v225 = vmax.f32 %v202, 0.0
    %v226 = vmax.f32 %v206, 0.0
    %v227 = vmax.f32 %v208, 0.0
    %v228 = vmax.f32 %v210, 0.0
    %v229 = vmax.f32 %v212, 0.0
    %v230 = vpack.c.bf16 %v216, %v214
    %v231 = vpack.c.bf16 %v217, %v215
    %v232 = vpack.c.bf16 %v220, %v218
    %v233 = vpack.c.bf16 %v221, %v219
    %v234 = vpack.c.bf16 %v224, %v222
    %v235 = vpack.c.bf16 %v225, %v223
    %v236 = vpack.c.bf16 %v228, %v226
    %v237 = vpack.c.bf16 %v229, %v227
    %v238 = vld [vmem:[%s3] sm:$0xf]
    %v239 = vld [vmem:[%s3 + $0x4] sm:$0xf]
    %v240 = vld [vmem:[%s3 + $0x8] sm:$0xf]
    %v241 = vld [vmem:[%s3 + $0xc] sm:$0xf]
    %v242 = vld [vmem:[%s3 + $0x10] sm:$0xf]
    %v243 = vld [vmem:[%s3 + $0x14] sm:$0xf]
    %v244 = vld [vmem:[%s3 + $0x18] sm:$0xf]
    %v245 = vld [vmem:[%s3 + $0x1c] sm:$0xf]
    %v246 = vld [vmem:[%s4] sm:$0xff]
    %v247 = vld [vmem:[%s4 + $0x8] sm:$0xff]
    %v248 = vld [vmem:[%s4 + $0x10] sm:$0xff]
    %v249 = vld [vmem:[%s4 + $0x18] sm:$0xff]
    %v250 = vld [vmem:[%s4 + $0x20] sm:$0xff]
    %v251 = vld [vmem:[%s4 + $0x28] sm:$0xff]
    %v252 = vld [vmem:[%s4 + $0x30] sm:$0xff]
    %v253 = vld [vmem:[%s4 + $0x38] sm:$0xff]
    %255 = vset.pattern.permute.xlu0 0
    %256 = vperm.xlu0 %255, %v246
    %v257 = vpop.permute.xlu0 %256
    %260 = vset.pattern.permute.xlu0 0
    %261 = vperm.xlu0 %260, %v247
    %v262 = vpop.permute.xlu0 %261
    %265 = vset.pattern.permute.xlu0 0
    %266 = vperm.xlu0 %265, %v248
    %v267 = vpop.permute.xlu0 %266
    %270 = vset.pattern.permute.xlu0 0
    %271 = vperm.xlu0 %270, %v249
    %v272 = vpop.permute.xlu0 %271
    %275 = vset.pattern.permute.xlu0 0
    %276 = vperm.xlu0 %275, %v250
    %v277 = vpop.permute.xlu0 %276
    %280 = vset.pattern.permute.xlu0 0
    %281 = vperm.xlu0 %280, %v251
    %v282 = vpop.permute.xlu0 %281
    %285 = vset.pattern.permute.xlu0 0
    %286 = vperm.xlu0 %285, %v252
    %v287 = vpop.permute.xlu0 %286
    %290 = vset.pattern.permute.xlu0 0
    %291 = vperm.xlu0 %290, %v253
    %v292 = vpop.permute.xlu0 %291
    %v302 = vunpack.c.l.b16 %v238
    %v303 = vunpack.c.l.b16 %v239
    %v304 = vunpack.c.l.b16 %v240
    %v305 = vunpack.c.l.b16 %v241
    %v306 = vunpack.c.l.b16 %v242
    %v307 = vunpack.c.l.b16 %v243
    %v308 = vunpack.c.l.b16 %v244
    %v309 = vunpack.c.l.b16 %v245
    %v310 = vpack.c.b16 %v303, %v302
    %v311 = vpack.c.b16 %v305, %v304
    %v312 = vpack.c.b16 %v307, %v306
    %v313 = vpack.c.b16 %v309, %v308
    %vm314 = vcmask 523264
    %v316 = vsel %vm314, %v310, 0
    %v319 = vsel %vm314, %v311, 0
    %v322 = vsel %vm314, %v312, 0
    %v325 = vsel %vm314, %v313, 0
    %327 = vmatprep.subr.bf16.mxu0 %v231
    %328 = vmatpush1.bf16.msra.mxu0 %v230
    %329 = vmatprep.subr.bf16.mxu0 %v233
    %330 = vmatpush1.bf16.msra.mxu0 %v232
    %331 = vmatprep.subr.bf16.mxu0 %v235
    %332 = vmatpush1.bf16.msra.mxu0 %v234
    %333 = vmatprep.subr.bf16.mxu0 %v237
    %334 = vmatpush1.bf16.msra.mxu0 %v236
    %335 = vmatprep.subr.bf16.mxu0 0
    %336 = vmatpush1.bf16.msra.mxu0 0
    %337 = vmatprep.subr.bf16.mxu0 0
    %338 = vmatpush1.bf16.msra.mxu0 0
    %339 = vmatprep.subr.bf16.mxu0 0
    %340 = vmatpush1.bf16.msra.mxu0 0
    %341 = vmatprep.subr.bf16.mxu0 0
    %342 = vmatpush1.bf16.msra.mxu0 0
    %343 = vmatprep.subr.bf16.mxu0 0
    %344 = vmatpush1.bf16.msra.mxu0 0
    %345 = vmatprep.subr.bf16.mxu0 0
    %346 = vmatpush1.bf16.msra.mxu0 0
    %347 = vmatprep.subr.bf16.mxu0 0
    %348 = vmatpush1.bf16.msra.mxu0 0
    %349 = vmatprep.subr.bf16.mxu0 0
    %350 = vmatpush1.bf16.msra.mxu0 0
    %351 = vmatprep.subr.bf16.mxu0 0
    %352 = vmatpush1.bf16.msra.mxu0 0
    %353 = vmatprep.subr.bf16.mxu0 0
    %354 = vmatpush1.bf16.msra.mxu0 0
    %355 = vmatprep.subr.bf16.mxu0 0
    %356 = vmatpush1.bf16.msra.mxu0 0
    %357 = vmatprep.subr.bf16.mxu0 0
    %358 = vmatpush1.bf16.msra.mxu0 0
    %359 = vmatprep.mubr.bf16.mxu0 0
    %360 = vmatmul.mubr.bf16.gmra.mrb[0].mxu0 %v316
    %v361 = vpop.f32.mrb[0].mxu0
    %v362 = vadd.f32 %v257, %v361
    %v363 = vpop.f32.mrb[0].mxu0
    %v364 = vadd.f32 %v257, %v363
    %v365 = vpop.f32.mrb[0].mxu0
    %v366 = vadd.f32 %v262, %v365
    %v367 = vpop.f32.mrb[0].mxu0
    %v368 = vadd.f32 %v262, %v367
    %369 = vmatprep.mubr.bf16.mxu0 0
    %370 = vmatmul.mubr.bf16.gmra.mrb[0].mxu0 %v319
    %v371 = vpop.f32.mrb[0].mxu0
    %v372 = vadd.f32 %v267, %v371
    %v373 = vpop.f32.mrb[0].mxu0
    %v374 = vadd.f32 %v267, %v373
    %v375 = vpop.f32.mrb[0].mxu0
    %v376 = vadd.f32 %v272, %v375
    %v377 = vpop.f32.mrb[0].mxu0
    %v378 = vadd.f32 %v272, %v377
    %379 = vmatprep.mubr.bf16.mxu0 0
    %380 = vmatmul.mubr.bf16.gmra.mrb[0].mxu0 %v322
    %v381 = vpop.f32.mrb[0].mxu0
    %v382 = vadd.f32 %v277, %v381
    %v383 = vpop.f32.mrb[0].mxu0
    %v384 = vadd.f32 %v277, %v383
    %v385 = vpop.f32.mrb[0].mxu0
    %v386 = vadd.f32 %v282, %v385
    %v387 = vpop.f32.mrb[0].mxu0
    %v388 = vadd.f32 %v282, %v387
    %389 = vmatprep.mubr.bf16.mxu0 0
    %390 = vmatmul.mubr.bf16.gmra.mrb[0].mxu0 %v325
    %v391 = vpop.f32.mrb[0].mxu0
    %v392 = vadd.f32 %v287, %v391
    %v393 = vpop.f32.mrb[0].mxu0
    %v394 = vadd.f32 %v287, %v393
    %v395 = vpop.f32.mrb[0].mxu0
    %v396 = vadd.f32 %v292, %v395
    %v397 = vpop.f32.mrb[0].mxu0
    %v398 = vadd.f32 %v292, %v397
    %399 = vdwg.mxu0
    %v400 = vmax.f32 %v362, 0.0
    %v401 = vmax.f32 %v364, 0.0
    %v402 = vmax.f32 %v366, 0.0
    %v403 = vmax.f32 %v368, 0.0
    %v404 = vmax.f32 %v372, 0.0
    %v405 = vmax.f32 %v374, 0.0
    %v406 = vmax.f32 %v376, 0.0
    %v407 = vmax.f32 %v378, 0.0
    %v408 = vmax.f32 %v382, 0.0
    %v409 = vmax.f32 %v384, 0.0
    %v410 = vmax.f32 %v386, 0.0
    %v411 = vmax.f32 %v388, 0.0
    %v412 = vmax.f32 %v392, 0.0
    %v413 = vmax.f32 %v394, 0.0
    %v414 = vmax.f32 %v396, 0.0
    %v415 = vmax.f32 %v398, 0.0
    %v416 = vpack.c.bf16 %v402, %v400
    %v417 = vpack.c.bf16 %v403, %v401
    %v418 = vpack.c.bf16 %v406, %v404
    %v419 = vpack.c.bf16 %v407, %v405
    %v420 = vpack.c.bf16 %v410, %v408
    %v421 = vpack.c.bf16 %v411, %v409
    %v422 = vpack.c.bf16 %v414, %v412
    %v423 = vpack.c.bf16 %v415, %v413
    %v424 = vld [vmem:[%s5] sm:$0xf]
    %v425 = vld [vmem:[%s5 + $0x4] sm:$0xf]
    %v426 = vld [vmem:[%s5 + $0x8] sm:$0xf]
    %v427 = vld [vmem:[%s5 + $0xc] sm:$0xf]
    %v428 = vld [vmem:[%s6] sm:$0xff]
    %v429 = vld [vmem:[%s6 + $0x8] sm:$0xff]
    %v430 = vld [vmem:[%s6 + $0x10] sm:$0xff]
    %v431 = vld [vmem:[%s6 + $0x18] sm:$0xff]
    %433 = vset.pattern.permute.xlu0 0
    %434 = vperm.xlu0 %433, %v428
    %v435 = vpop.permute.xlu0 %434
    %438 = vset.pattern.permute.xlu0 0
    %439 = vperm.xlu0 %438, %v429
    %v440 = vpop.permute.xlu0 %439
    %443 = vset.pattern.permute.xlu0 0
    %444 = vperm.xlu0 %443, %v430
    %v445 = vpop.permute.xlu0 %444
    %448 = vset.pattern.permute.xlu0 0
    %449 = vperm.xlu0 %448, %v431
    %v450 = vpop.permute.xlu0 %449
    %v456 = vunpack.c.l.b16 %v424
    %v457 = vunpack.c.l.b16 %v425
    %v458 = vunpack.c.l.b16 %v426
    %v459 = vunpack.c.l.b16 %v427
    %v460 = vpack.c.b16 %v457, %v456
    %v461 = vpack.c.b16 %v459, %v458
    %v463 = vsel %vm314, %v460, 0
    %v466 = vsel %vm314, %v461, 0
    %468 = vmatprep.subr.bf16.mxu0 %v417
    %469 = vmatpush1.bf16.msra.mxu0 %v416
    %470 = vmatprep.subr.bf16.mxu0 %v419
    %471 = vmatpush1.bf16.msra.mxu0 %v418
    %472 = vmatprep.subr.bf16.mxu0 %v421
    %473 = vmatpush1.bf16.msra.mxu0 %v420
    %474 = vmatprep.subr.bf16.mxu0 %v423
    %475 = vmatpush1.bf16.msra.mxu0 %v422
    %476 = vmatprep.subr.bf16.mxu0 0
    %477 = vmatpush1.bf16.msra.mxu0 0
    %478 = vmatprep.subr.bf16.mxu0 0
    %479 = vmatpush1.bf16.msra.mxu0 0
    %480 = vmatprep.subr.bf16.mxu0 0
    %481 = vmatpush1.bf16.msra.mxu0 0
    %482 = vmatprep.subr.bf16.mxu0 0
    %483 = vmatpush1.bf16.msra.mxu0 0
    %484 = vmatprep.subr.bf16.mxu0 0
    %485 = vmatpush1.bf16.msra.mxu0 0
    %486 = vmatprep.subr.bf16.mxu0 0
    %487 = vmatpush1.bf16.msra.mxu0 0
    %488 = vmatprep.subr.bf16.mxu0 0
    %489 = vmatpush1.bf16.msra.mxu0 0
    %490 = vmatprep.subr.bf16.mxu0 0
    %491 = vmatpush1.bf16.msra.mxu0 0
    %492 = vmatprep.subr.bf16.mxu0 0
    %493 = vmatpush1.bf16.msra.mxu0 0
    %494 = vmatprep.subr.bf16.mxu0 0
    %495 = vmatpush1.bf16.msra.mxu0 0
    %496 = vmatprep.subr.bf16.mxu0 0
    %497 = vmatpush1.bf16.msra.mxu0 0
    %498 = vmatprep.subr.bf16.mxu0 0
    %499 = vmatpush1.bf16.msra.mxu0 0
    %500 = vmatprep.mubr.bf16.mxu0 0
    %501 = vmatmul.mubr.bf16.gmra.mrb[0].mxu0 %v463
    %v502 = vpop.f32.mrb[0].mxu0
    %v503 = vadd.f32 %v435, %v502
    %v504 = vpop.f32.mrb[0].mxu0
    %v505 = vadd.f32 %v435, %v504
    %v506 = vpop.f32.mrb[0].mxu0
    %v507 = vadd.f32 %v440, %v506
    %v508 = vpop.f32.mrb[0].mxu0
    %v509 = vadd.f32 %v440, %v508
    %510 = vmatprep.mubr.bf16.mxu0 0
    %511 = vmatmul.mubr.bf16.gmra.mrb[0].mxu0 %v466
    %v512 = vpop.f32.mrb[0].mxu0
    %v513 = vadd.f32 %v445, %v512
    %v514 = vpop.f32.mrb[0].mxu0
    %v515 = vadd.f32 %v445, %v514
    %v516 = vpop.f32.mrb[0].mxu0
    %v517 = vadd.f32 %v450, %v516
    %v518 = vpop.f32.mrb[0].mxu0
    %v519 = vadd.f32 %v450, %v518
    %520 = vdwg.mxu0
    %521 = vst [vmem:[#allocation2] sm:$0xff] %v503
    %522 = vst [vmem:[#allocation2 + $0x8] sm:$0xff] %v505
    %523 = vst [vmem:[#allocation2 + $0x10] sm:$0xff] %v507
    %524 = vst [vmem:[#allocation2 + $0x18] sm:$0xff] %v509
    %525 = vst [vmem:[#allocation2 + $0x20] sm:$0xff] %v513
    %526 = vst [vmem:[#allocation2 + $0x28] sm:$0xff] %v515
    %527 = vst [vmem:[#allocation2 + $0x30] sm:$0xff] %v517
    %528 = vst [vmem:[#allocation2 + $0x38] sm:$0xff] %v519
    // Predicated region
    $region30: #{deep_network_forward.1} parent=1 // pred_check
      _
    $region31: #{deep_network_forward.1} parent=1 // pred_check_branch
      %530 = sbr.rel (0) target = $region33
    $region32: #{deep_network_forward.1} parent=1 // pred_region
      %s532 = ssub.s32 1024, 1024
      %533 = vsyncadd [#allocation3], %s532
      %s534 = sshll.u32 [#allocation2], 4
      %s535 = int_to_ptr.vmem [resolvable:$true] %s534
      %540 = dma.vmem_to_hbm [thread:$0]  %s535, 1024, %s7, [#allocation3], 256, 256, 16
    $region33: #{deep_network_forward.1} parent=1 // pred_fallthru
      _
    // Predicated region
    $region34: #{deep_network_forward.1} parent=1 // pred_check
      _
    $region35: #{deep_network_forward.1} parent=1 // pred_check_branch
      %542 = sbr.rel (0) target = $region37
    $region36: #{deep_network_forward.1} parent=1 // pred_region
      %543 = dma.done [#allocation3], 1024
    $region37: #{deep_network_forward.1} parent=1 // pred_fallthru
      _
    %544 = vsyncpa [#allocation3], 1

</llo_original>
